<compile_context>
chip_gen: v7x
topology: tpu7x:2x2x1
jax: 0.10.0
libtpu: 0.0.40
codegen_flags: <defaults>
</compile_context>

<pallas_src>
import jax
import jax.numpy as jnp
import numpy as np
from jax import lax
from jax.experimental import pallas as pl
from jax.experimental.pallas import tpu as pltpu


# ---------------------------------------------------------------------------
# Fused decoder kernel (single invocation, everything in VMEM)
# ---------------------------------------------------------------------------
def _decoder_kernel(x_ref, skip_ref,
                    t1_ref, sb1_ref, t2_ref, sb2_ref,
                    t3e_ref, t3o_ref, sb3_ref,
                    u4e_ref, u4o_ref, sb4_ref,
                    d5_ref, sb5_ref,
                    y_ref, att_ref):
    B, H, _ = x_ref.shape

    def shift_up(t):      # out[:, m] = t[:, m + 1], zero last row (per batch)
        zero = jnp.zeros_like(t[:, :1, :])
        return jnp.concatenate([t[:, 1:, :], zero], axis=1)

    def shift_down(t):    # out[:, m] = t[:, m - 1], zero first row (per batch)
        zero = jnp.zeros_like(t[:, :1, :])
        return jnp.concatenate([zero, t[:, :-1, :]], axis=1)

    def affine(z, sb_ref):          # folded BN scale / bias, lane-dense
        return z * sb_ref[0:1, :] + sb_ref[1:2, :]

    def matmul(a, w_ref):           # one MXU matmul per conv stage
        return jnp.dot(a, w_ref[...], preferred_element_type=jnp.float32)

    # ---- conv1[0]: 3x3 conv + BN + ReLU (one Toeplitz matmul) --------------
    x = x_ref[...]                                                  # (B,H,W*Cin)
    band = jnp.concatenate([shift_down(x), x, shift_up(x)], axis=-1)
    h = jnp.maximum(affine(matmul(band.reshape(B * H, -1), t1_ref), sb1_ref), 0.0)
    h = h.reshape(B, H, -1)                                         # (B,H,W*C2)

    # ---- conv1[3]: 3x3 conv + BN + ReLU ------------------------------------
    band = jnp.concatenate([shift_down(h), h, shift_up(h)], axis=-1)
    h = jnp.maximum(affine(matmul(band.reshape(B * H, -1), t2_ref), sb2_ref), 0.0)
    h = h.reshape(B, H, -1)                                         # (B,H,W*C2)

    # ---- Upsample: ConvT(3,2,1,1) + BN + ReLU, subpixel form ---------------
    # even output rows (2a)   <- input row a           (kh = 1 taps)
    # odd  output rows (2a+1) <- input rows a, a+1     (kh = 2 / kh = 0 taps)
    e3 = jnp.maximum(affine(matmul(h.reshape(B * H, -1), t3e_ref), sb3_ref), 0.0)
    band = jnp.concatenate([h, shift_up(h)], axis=-1)               # (B,H,2*W*C2)
    o3 = jnp.maximum(affine(matmul(band.reshape(B * H, -1), t3o_ref), sb3_ref), 0.0)
    e3 = e3.reshape(B, H, -1)                   # (B,H,2W*Co): y rows 2a
    o3 = o3.reshape(B, H, -1)                   # (B,H,2W*Co): y rows 2a+1
    y_ref[...] = jnp.stack([e3, o3], axis=0)    # (2,B,H,2W*Co), lane-dense

    # ---- a1.attention[0]: ConvT(3,2,1,1) + BN + ReLU on y ------------------
    # y rows are i = 2a + r (r selects the plane above).
    eo = jnp.stack([e3, o3], axis=1)                  # (B,2,H,2W*Co): y row 2a+r
    nxt = jnp.stack([o3, shift_up(e3)], axis=1)       # (B,2,H,2W*Co): y row 2a+r+1
    g_even = matmul(eo.reshape(B * 2 * H, -1), u4e_ref)        # g rows 4a+2r
    band = jnp.concatenate([eo, nxt], axis=-1)                 # (B,2,H,4W*Co)
    g_odd = matmul(band.reshape(B * 2 * H, -1), u4o_ref)       # g rows 4a+2r+1
    g = jnp.concatenate([g_even, g_odd], axis=0)               # (4BH, 4W*Co)
    g = jnp.maximum(affine(g, sb4_ref), 0.0)

    # ---- a1.attention[3]: 1x1 conv + BN + Sigmoid, gate the skip path ------
    z = affine(matmul(g, d5_ref), sb5_ref)
    att_ref[...] = skip_ref[...] * jax.nn.sigmoid(z)           # (4BH, 4W*Co)


def fused_decoder_pallas(x_rows, skip_rows, kp):
    B, H, _ = x_rows.shape
    wco2 = kp["t3e"].shape[1]        # 2W * out_ch
    wco4 = kp["u4e"].shape[1]        # 4W * out_ch
    vmem = pl.BlockSpec(memory_space=pltpu.MemorySpace.VMEM)
    return pl.pallas_call(
        _decoder_kernel,
        out_shape=(jax.ShapeDtypeStruct((2, B, H, wco2), jnp.float32),
                   jax.ShapeDtypeStruct((4 * B * H, wco4), jnp.float32)),
        in_specs=[vmem] * 14,
        out_specs=(vmem, vmem),
    )(x_rows, skip_rows,
      kp["t1"], kp["sb1"], kp["t2"], kp["sb2"],
      kp["t3e"], kp["t3o"], kp["sb3"],
      kp["u4e"], kp["u4o"], kp["sb4"],
      kp["d5"], kp["sb5"])


# ---------------------------------------------------------------------------
# Host-side weight transforms (built once, outside the jitted forward)
# ---------------------------------------------------------------------------
def _conv3x3_row_matrix(w_hwio, W):
    """(3,3,Cin,Cout) -> (3*W*Cin, W*Cout) acting on [row-1|row|row+1] bands;
    padding=1 column handling is folded into the block-Toeplitz structure."""
    blocks = []
    for dy in range(3):
        blk = 0.0
        for dx in range(3):
            blk = blk + jnp.kron(jnp.eye(W, W, k=1 - dx, dtype=jnp.float32),
                                 w_hwio[dy, dx])
        blocks.append(blk)
    return jnp.concatenate(blocks, axis=0)


def _convt_row_matrix(wt, kh, w_in):
    """One kh-tap set of ConvTranspose2d(3, stride=2, padding=1, output_padding=1):
    maps one input row (w_in*Cin) to its contribution to one output row
    (2*w_in*Cout).  wt is the PyTorch (Cin, Cout, kh, kw) weight."""
    def sel(t):
        a = np.zeros((w_in, 2 * w_in), np.float32)
        for i in range(w_in):
            o = 2 * i + t
            if 0 <= o < 2 * w_in:
                a[i, o] = 1.0
        return jnp.asarray(a)
    return (jnp.kron(sel(0), wt[:, :, kh, 1]) +
            jnp.kron(sel(1), wt[:, :, kh, 2]) +
            jnp.kron(sel(-1), wt[:, :, kh, 0]))


def prepare_kernel_params(p, W):
    """Turn module weights into the matmul operands used by the fused kernel."""
    def sb(scale, bias, width):
        return jnp.stack([jnp.tile(scale, width), jnp.tile(bias, width)], axis=0)

    kp = {}
    kp["t1"] = _conv3x3_row_matrix(p["w1"], W)
    kp["sb1"] = sb(p["s1"], p["b1"], W)
    kp["t2"] = _conv3x3_row_matrix(p["w2"], W)
    kp["sb2"] = sb(p["s2"], p["b2"], W)
    kp["t3e"] = _convt_row_matrix(p["wt_up"], 1, W)
    kp["t3o"] = jnp.concatenate([_convt_row_matrix(p["wt_up"], 2, W),
                                 _convt_row_matrix(p["wt_up"], 0, W)], axis=0)
    kp["sb3"] = sb(p["s_up"], p["b_up"], 2 * W)
    kp["u4e"] = _convt_row_matrix(p["wt_a1"], 1, 2 * W)
    kp["u4o"] = jnp.concatenate([_convt_row_matrix(p["wt_a1"], 2, 2 * W),
                                 _convt_row_matrix(p["wt_a1"], 0, 2 * W)], axis=0)
    kp["sb4"] = sb(p["s_a1"], p["b_a1"], 4 * W)
    kp["d5"] = jnp.kron(jnp.eye(4 * W, dtype=jnp.float32), p["w_a2"])
    kp["sb5"] = sb(p["s_a2"], p["b_a2"], 4 * W)
    return kp


# ---------------------------------------------------------------------------
# Decoder forward (JAX wrapper: free reshapes + tiny layout transposes only)
# ---------------------------------------------------------------------------
@jax.jit
def decoder_forward(x, concat, kp):
    """x: (B, H, W, in_ch) NHWC; concat: (B, 4H, 4W, out_ch) NHWC skip."""
    B, H, W, Cin = x.shape
    Co = concat.shape[-1]
    x_rows = x.reshape(B, H, W * Cin)                        # free reshape
    # Skip features re-ordered to the kernel's row grouping; rows of the
    # 4H x 4W grid are 4a + 2r + p -> kernel row p*2BH + b*2H + r*H + a.
    skip_rows = (concat.reshape(B, H, 2, 2, 4 * W * Co)
                 .transpose(3, 0, 2, 1, 4)
                 .reshape(4 * B * H, 4 * W * Co))
    y_k, att_k = fused_decoder_pallas(x_rows, skip_rows, kp)
    # Undo the kernel's row grouping (free reshapes + one tiny transpose each).
    y = y_k.transpose(1, 2, 0, 3).reshape(B, 2 * H, 2 * W, Co)
    att = (att_k.reshape(2, B, 2, H, 4 * W * Co)
           .transpose(1, 3, 2, 0, 4)
           .reshape(B, 4 * H, 4 * W, Co))
    # TODO(synk): the source module ends with torch.concat((y, attended), dim=1),
    # but y is (B, out_ch, 2H, 2W) while attended is (B, out_ch, 4H, 4W); the
    # shapes are incompatible in PyTorch too, so both tensors are returned.
    return y, att


# ---------------------------------------------------------------------------
# Parameters (deterministic synthetic init) + pure-JAX reference
# ---------------------------------------------------------------------------
def fold_bn(conv_bias, gamma, beta, eps=1e-5):
    # BatchNorm2d eval mode with running_mean=0, running_var=1 (synthetic init).
    # TODO(synk): fold real running statistics when loading a trained checkpoint.
    scale = gamma / jnp.sqrt(1.0 + eps)
    return scale, conv_bias * scale + beta


def init_params(key, in_ch, out_ch):
    ks = jax.random.split(key, 20)
    nrm = lambda k, shp, s=0.1: s * jax.random.normal(k, shp, jnp.float32)
    c2 = out_ch * 2
    p = {}
    # conv1[0]: Conv2d(in_ch, 2*out_ch, 3, 1, 1) + BN + ReLU   (HWIO weight)
    p["w1"] = nrm(ks[0], (3, 3, in_ch, c2))
    p["s1"], p["b1"] = fold_bn(nrm(ks[1], (c2,)), 1.0 + nrm(ks[2], (c2,)), nrm(ks[3], (c2,)))
    # conv1[3]: Conv2d(2*out_ch, 2*out_ch, 3, 1, 1) + BN + ReLU
    p["w2"] = nrm(ks[4], (3, 3, c2, c2))
    p["s2"], p["b2"] = fold_bn(nrm(ks[5], (c2,)), 1.0 + nrm(ks[6], (c2,)), nrm(ks[7], (c2,)))
    # Upsample: ConvTranspose2d(2*out_ch, out_ch, 3, 2, 1, 1) + BN + ReLU
    p["wt_up"] = nrm(ks[8], (c2, out_ch, 3, 3))              # torch (Cin,Cout,kh,kw)
    p["s_up"], p["b_up"] = fold_bn(nrm(ks[9], (out_ch,)), 1.0 + nrm(ks[10], (out_ch,)),
                                   nrm(ks[11], (out_ch,)))
    # a1.attention[0]: ConvTranspose2d(out_ch, out_ch, 3, 2, 1, 1) + BN + ReLU
    p["wt_a1"] = nrm(ks[12], (out_ch, out_ch, 3, 3))
    p["s_a1"], p["b_a1"] = fold_bn(nrm(ks[13], (out_ch,)), 1.0 + nrm(ks[14], (out_ch,)),
                                   nrm(ks[15], (out_ch,)))
    # a1.attention[3]: Conv2d(out_ch, out_ch, 1) + BN + Sigmoid
    p["w_a2"] = nrm(ks[16], (out_ch, out_ch))                # (Cin, Cout)
    p["s_a2"], p["b_a2"] = fold_bn(nrm(ks[17], (out_ch,)), 1.0 + nrm(ks[18], (out_ch,)),
                                   nrm(ks[19], (out_ch,)))
    return p


def ref_forward(x, concat, p):
    dn = ("NHWC", "HWIO", "NHWC")
    hi = jax.lax.Precision.HIGHEST

    h = jnp.maximum(lax.conv_general_dilated(
        x, p["w1"], (1, 1), ((1, 1), (1, 1)), dimension_numbers=dn,
        precision=hi) * p["s1"] + p["b1"], 0.0)
    h = jnp.maximum(lax.conv_general_dilated(
        h, p["w2"], (1, 1), ((1, 1), (1, 1)), dimension_numbers=dn,
        precision=hi) * p["s2"] + p["b2"], 0.0)
    w_up = jnp.transpose(jnp.flip(p["wt_up"], (2, 3)), (2, 3, 0, 1))
    y = jnp.maximum(lax.conv_general_dilated(
        h, w_up, (1, 1), ((1, 2), (1, 2)), lhs_dilation=(2, 2),
        dimension_numbers=dn, precision=hi) * p["s_up"] + p["b_up"], 0.0)
    w_a1 = jnp.transpose(jnp.flip(p["wt_a1"], (2, 3)), (2, 3, 0, 1))
    g = jnp.maximum(lax.conv_general_dilated(
        y, w_a1, (1, 1), ((1, 2), (1, 2)), lhs_dilation=(2, 2),
        dimension_numbers=dn, precision=hi) * p["s_a1"] + p["b_a1"], 0.0)
    z = jnp.einsum("bhwc,cd->bhwd", g, p["w_a2"], precision=hi) * p["s_a2"] + p["b_a2"]
    return y, concat * jax.nn.sigmoid(z)


if __name__ == "__main__":
    key = jax.random.PRNGKey(0)
    kx, kc, kw = jax.random.split(key, 3)

    B, in_ch, out_ch, H, W = 2, 8, 4, 8, 8
    # PyTorch NCHW equivalents: x = (2, 8, 8, 8), concat = (2, 4, 32, 32).
    x = jax.random.normal(kx, (B, H, W, in_ch), jnp.float32)
    concat = jax.random.normal(kc, (B, 4 * H, 4 * W, out_ch), jnp.float32)
    params = init_params(kw, in_ch, out_ch)
    kparams = prepare_kernel_params(params, W)

    y, attended = jax.block_until_ready(decoder_forward(x, concat, kparams))
    assert y.shape == (B, 2 * H, 2 * W, out_ch)
    assert attended.shape == (B, 4 * H, 4 * W, out_ch)

    y_ref, att_ref = ref_forward(x, concat, params)
    np.testing.assert_allclose(np.asarray(y), np.asarray(y_ref), atol=1e-3, rtol=1e-3)
    np.testing.assert_allclose(np.asarray(attended), np.asarray(att_ref),
                               atol=1e-3, rtol=1e-3)
    print("KERNEL_OK")
</pallas_src>

<mosaic_0001>
module attributes {stable_mosaic.version = 11 : i64} {
  func.func @_decoder_kernel(%arg0: memref<2x8x64xf32, #tpu.memory_space<vmem>>, %arg1: memref<64x128xf32, #tpu.memory_space<vmem>>, %arg2: memref<192x64xf32, #tpu.memory_space<vmem>>, %arg3: memref<2x64xf32, #tpu.memory_space<vmem>>, %arg4: memref<192x64xf32, #tpu.memory_space<vmem>>, %arg5: memref<2x64xf32, #tpu.memory_space<vmem>>, %arg6: memref<64x64xf32, #tpu.memory_space<vmem>>, %arg7: memref<128x64xf32, #tpu.memory_space<vmem>>, %arg8: memref<2x64xf32, #tpu.memory_space<vmem>>, %arg9: memref<64x128xf32, #tpu.memory_space<vmem>>, %arg10: memref<128x128xf32, #tpu.memory_space<vmem>>, %arg11: memref<2x128xf32, #tpu.memory_space<vmem>>, %arg12: memref<128x128xf32, #tpu.memory_space<vmem>>, %arg13: memref<2x128xf32, #tpu.memory_space<vmem>>, %arg14: memref<2x2x8x64xf32, #tpu.memory_space<vmem>>, %arg15: memref<64x128xf32, #tpu.memory_space<vmem>>) attributes {dimension_semantics = [], scalar_prefetch = 0 : i64, scratch_operands = 0 : i64, tpu.core_type = #tpu.core_type<tc>} {
    %c0 = arith.constant 0 : index
    %c0_0 = arith.constant 0 : index
    %c0_1 = arith.constant 0 : index
    %0 = vector.load %arg0[%c0, %c0_0, %c0_1] : memref<2x8x64xf32, #tpu.memory_space<vmem>>, vector<2x8x64xf32>
    %cst = arith.constant 0.000000e+00 : f32
    %1 = vector.broadcast %cst : f32 to vector<2x1x64xf32>
    %2 = vector.extract_strided_slice %0 {offsets = [0, 0, 0], sizes = [2, 7, 64], strides = [1, 1, 1]} : vector<2x8x64xf32> to vector<2x7x64xf32>
    %3 = tpu.concatenate %1, %2 in 1 : vector<2x1x64xf32>, vector<2x7x64xf32> -> vector<2x8x64xf32>
    %cst_2 = arith.constant 0.000000e+00 : f32
    %4 = vector.broadcast %cst_2 : f32 to vector<2x1x64xf32>
    %5 = vector.extract_strided_slice %0 {offsets = [0, 1, 0], sizes = [2, 7, 64], strides = [1, 1, 1]} : vector<2x8x64xf32> to vector<2x7x64xf32>
    %6 = tpu.concatenate %5, %4 in 1 : vector<2x7x64xf32>, vector<2x1x64xf32> -> vector<2x8x64xf32>
    %7 = tpu.concatenate %3, %0, %6 in 2 : vector<2x8x64xf32>, vector<2x8x64xf32>, vector<2x8x64xf32> -> vector<2x8x192xf32>
    %8 = vector.shape_cast %7 : vector<2x8x192xf32> to vector<16x192xf32>
    %c0_3 = arith.constant 0 : index
    %c0_4 = arith.constant 0 : index
    %9 = vector.load %arg2[%c0_3, %c0_4] : memref<192x64xf32, #tpu.memory_space<vmem>>, vector<192x64xf32>
    %cst_5 = arith.constant dense<0.000000e+00> : vector<16x64xf32>
    %10 = tpu.matmul %8, %9, %cst_5 {dimension_numbers = #tpu.dot_dimension_numbers<[1], [0], [0], [1], [0, 0, 1, 1], [], []>} : vector<16x192xf32>, vector<192x64xf32>, vector<16x64xf32> -> vector<16x64xf32>
    %c0_6 = arith.constant 0 : index
    %c0_7 = arith.constant 0 : index
    %11 = vector.load %arg3[%c0_6, %c0_7] : memref<2x64xf32, #tpu.memory_space<vmem>>, vector<1x64xf32>
    %12 = vector.broadcast %11 : vector<1x64xf32> to vector<16x64xf32>
    %13 = arith.mulf %10, %12 : vector<16x64xf32>
    %c1 = arith.constant 1 : index
    %c0_8 = arith.constant 0 : index
    %14 = vector.load %arg3[%c1, %c0_8] : memref<2x64xf32, #tpu.memory_space<vmem>>, vector<1x64xf32>
    %15 = vector.broadcast %14 : vector<1x64xf32> to vector<16x64xf32>
    %16 = arith.addf %13, %15 : vector<16x64xf32>
    %cst_9 = arith.constant 0.000000e+00 : f32
    %17 = vector.broadcast %cst_9 : f32 to vector<16x64xf32>
    %18 = arith.maximumf %16, %17 : vector<16x64xf32>
    %19 = vector.shape_cast %18 : vector<16x64xf32> to vector<2x8x64xf32>
    %cst_10 = arith.constant 0.000000e+00 : f32
    %20 = vector.broadcast %cst_10 : f32 to vector<2x1x64xf32>
    %21 = vector.extract_strided_slice %19 {offsets = [0, 0, 0], sizes = [2, 7, 64], strides = [1, 1, 1]} : vector<2x8x64xf32> to vector<2x7x64xf32>
    %22 = tpu.concatenate %20, %21 in 1 : vector<2x1x64xf32>, vector<2x7x64xf32> -> vector<2x8x64xf32>
    %cst_11 = arith.constant 0.000000e+00 : f32
    %23 = vector.broadcast %cst_11 : f32 to vector<2x1x64xf32>
    %24 = vector.extract_strided_slice %19 {offsets = [0, 1, 0], sizes = [2, 7, 64], strides = [1, 1, 1]} : vector<2x8x64xf32> to vector<2x7x64xf32>
    %25 = tpu.concatenate %24, %23 in 1 : vector<2x7x64xf32>, vector<2x1x64xf32> -> vector<2x8x64xf32>
    %26 = tpu.concatenate %22, %19, %25 in 2 : vector<2x8x64xf32>, vector<2x8x64xf32>, vector<2x8x64xf32> -> vector<2x8x192xf32>
    %27 = vector.shape_cast %26 : vector<2x8x192xf32> to vector<16x192xf32>
    %c0_12 = arith.constant 0 : index
    %c0_13 = arith.constant 0 : index
    %28 = vector.load %arg4[%c0_12, %c0_13] : memref<192x64xf32, #tpu.memory_space<vmem>>, vector<192x64xf32>
    %cst_14 = arith.constant dense<0.000000e+00> : vector<16x64xf32>
    %29 = tpu.matmul %27, %28, %cst_14 {dimension_numbers = #tpu.dot_dimension_numbers<[1], [0], [0], [1], [0, 0, 1, 1], [], []>} : vector<16x192xf32>, vector<192x64xf32>, vector<16x64xf32> -> vector<16x64xf32>
    %c0_15 = arith.constant 0 : index
    %c0_16 = arith.constant 0 : index
    %30 = vector.load %arg5[%c0_15, %c0_16] : memref<2x64xf32, #tpu.memory_space<vmem>>, vector<1x64xf32>
    %31 = vector.broadcast %30 : vector<1x64xf32> to vector<16x64xf32>
    %32 = arith.mulf %29, %31 : vector<16x64xf32>
    %c1_17 = arith.constant 1 : index
    %c0_18 = arith.constant 0 : index
    %33 = vector.load %arg5[%c1_17, %c0_18] : memref<2x64xf32, #tpu.memory_space<vmem>>, vector<1x64xf32>
    %34 = vector.broadcast %33 : vector<1x64xf32> to vector<16x64xf32>
    %35 = arith.addf %32, %34 : vector<16x64xf32>
    %cst_19 = arith.constant 0.000000e+00 : f32
    %36 = vector.broadcast %cst_19 : f32 to vector<16x64xf32>
    %37 = arith.maximumf %35, %36 : vector<16x64xf32>
    %38 = vector.shape_cast %37 : vector<16x64xf32> to vector<2x8x64xf32>
    %39 = vector.shape_cast %38 : vector<2x8x64xf32> to vector<16x64xf32>
    %c0_20 = arith.constant 0 : index
    %c0_21 = arith.constant 0 : index
    %40 = vector.load %arg6[%c0_20, %c0_21] : memref<64x64xf32, #tpu.memory_space<vmem>>, vector<64x64xf32>
    %cst_22 = arith.constant dense<0.000000e+00> : vector<16x64xf32>
    %41 = tpu.matmul %39, %40, %cst_22 {dimension_numbers = #tpu.dot_dimension_numbers<[1], [0], [0], [1], [0, 0, 1, 1], [], []>} : vector<16x64xf32>, vector<64x64xf32>, vector<16x64xf32> -> vector<16x64xf32>
    %c0_23 = arith.constant 0 : index
    %c0_24 = arith.constant 0 : index
    %42 = vector.load %arg8[%c0_23, %c0_24] : memref<2x64xf32, #tpu.memory_space<vmem>>, vector<1x64xf32>
    %43 = vector.broadcast %42 : vector<1x64xf32> to vector<16x64xf32>
    %44 = arith.mulf %41, %43 : vector<16x64xf32>
    %c1_25 = arith.constant 1 : index
    %c0_26 = arith.constant 0 : index
    %45 = vector.load %arg8[%c1_25, %c0_26] : memref<2x64xf32, #tpu.memory_space<vmem>>, vector<1x64xf32>
    %46 = vector.broadcast %45 : vector<1x64xf32> to vector<16x64xf32>
    %47 = arith.addf %44, %46 : vector<16x64xf32>
    %cst_27 = arith.constant 0.000000e+00 : f32
    %48 = vector.broadcast %cst_27 : f32 to vector<16x64xf32>
    %49 = arith.maximumf %47, %48 : vector<16x64xf32>
    %cst_28 = arith.constant 0.000000e+00 : f32
    %50 = vector.broadcast %cst_28 : f32 to vector<2x1x64xf32>
    %51 = vector.extract_strided_slice %38 {offsets = [0, 1, 0], sizes = [2, 7, 64], strides = [1, 1, 1]} : vector<2x8x64xf32> to vector<2x7x64xf32>
    %52 = tpu.concatenate %51, %50 in 1 : vector<2x7x64xf32>, vector<2x1x64xf32> -> vector<2x8x64xf32>
    %53 = tpu.concatenate %38, %52 in 2 : vector<2x8x64xf32>, vector<2x8x64xf32> -> vector<2x8x128xf32>
    %54 = vector.shape_cast %53 : vector<2x8x128xf32> to vector<16x128xf32>
    %c0_29 = arith.constant 0 : index
    %c0_30 = arith.constant 0 : index
    %55 = vector.load %arg7[%c0_29, %c0_30] : memref<128x64xf32, #tpu.memory_space<vmem>>, vector<128x64xf32>
    %cst_31 = arith.constant dense<0.000000e+00> : vector<16x64xf32>
    %56 = tpu.matmul %54, %55, %cst_31 {dimension_numbers = #tpu.dot_dimension_numbers<[1], [0], [0], [1], [0, 0, 1, 1], [], []>} : vector<16x128xf32>, vector<128x64xf32>, vector<16x64xf32> -> vector<16x64xf32>
    %c0_32 = arith.constant 0 : index
    %c0_33 = arith.constant 0 : index
    %57 = vector.load %arg8[%c0_32, %c0_33] : memref<2x64xf32, #tpu.memory_space<vmem>>, vector<1x64xf32>
    %58 = vector.broadcast %57 : vector<1x64xf32> to vector<16x64xf32>
    %59 = arith.mulf %56, %58 : vector<16x64xf32>
    %c1_34 = arith.constant 1 : index
    %c0_35 = arith.constant 0 : index
    %60 = vector.load %arg8[%c1_34, %c0_35] : memref<2x64xf32, #tpu.memory_space<vmem>>, vector<1x64xf32>
    %61 = vector.broadcast %60 : vector<1x64xf32> to vector<16x64xf32>
    %62 = arith.addf %59, %61 : vector<16x64xf32>
    %cst_36 = arith.constant 0.000000e+00 : f32
    %63 = vector.broadcast %cst_36 : f32 to vector<16x64xf32>
    %64 = arith.maximumf %62, %63 : vector<16x64xf32>
    %65 = vector.shape_cast %49 : vector<16x64xf32> to vector<2x8x64xf32>
    %66 = vector.shape_cast %64 : vector<16x64xf32> to vector<2x8x64xf32>
    %67 = vector.shape_cast %65 : vector<2x8x64xf32> to vector<1x2x8x64xf32>
    %68 = vector.shape_cast %66 : vector<2x8x64xf32> to vector<1x2x8x64xf32>
    %69 = tpu.concatenate %67, %68 in 0 : vector<1x2x8x64xf32>, vector<1x2x8x64xf32> -> vector<2x2x8x64xf32>
    %c0_37 = arith.constant 0 : index
    %c0_38 = arith.constant 0 : index
    %c0_39 = arith.constant 0 : index
    %c0_40 = arith.constant 0 : index
    %70 = vector.load %arg14[%c0_37, %c0_38, %c0_39, %c0_40] : memref<2x2x8x64xf32, #tpu.memory_space<vmem>>, vector<2x2x8x64xf32>
    tpu.vector_store %arg14[%c0_37, %c0_38, %c0_39, %c0_40], %69 {strides = array<i32>} : memref<2x2x8x64xf32, #tpu.memory_space<vmem>>, vector<2x2x8x64xf32>,
    %71 = vector.shape_cast %65 : vector<2x8x64xf32> to vector<2x1x8x64xf32>
    %72 = vector.shape_cast %66 : vector<2x8x64xf32> to vector<2x1x8x64xf32>
    %73 = tpu.concatenate %71, %72 in 1 : vector<2x1x8x64xf32>, vector<2x1x8x64xf32> -> vector<2x2x8x64xf32>
    %cst_41 = arith.constant 0.000000e+00 : f32
    %74 = vector.broadcast %cst_41 : f32 to vector<2x1x64xf32>
    %75 = vector.extract_strided_slice %65 {offsets = [0, 1, 0], sizes = [2, 7, 64], strides = [1, 1, 1]} : vector<2x8x64xf32> to vector<2x7x64xf32>
    %76 = tpu.concatenate %75, %74 in 1 : vector<2x7x64xf32>, vector<2x1x64xf32> -> vector<2x8x64xf32>
    %77 = vector.shape_cast %66 : vector<2x8x64xf32> to vector<2x1x8x64xf32>
    %78 = vector.shape_cast %76 : vector<2x8x64xf32> to vector<2x1x8x64xf32>
    %79 = tpu.concatenate %77, %78 in 1 : vector<2x1x8x64xf32>, vector<2x1x8x64xf32> -> vector<2x2x8x64xf32>
    %80 = vector.shape_cast %73 : vector<2x2x8x64xf32> to vector<32x64xf32>
    %c0_42 = arith.constant 0 : index
    %c0_43 = arith.constant 0 : index
    %81 = vector.load %arg9[%c0_42, %c0_43] : memref<64x128xf32, #tpu.memory_space<vmem>>, vector<64x128xf32>
    %cst_44 = arith.constant dense<0.000000e+00> : vector<32x128xf32>
    %82 = tpu.matmul %80, %81, %cst_44 {dimension_numbers = #tpu.dot_dimension_numbers<[1], [0], [0], [1], [0, 0, 1, 1], [], []>} : vector<32x64xf32>, vector<64x128xf32>, vector<32x128xf32> -> vector<32x128xf32>
    %83 = tpu.concatenate %73, %79 in 3 : vector<2x2x8x64xf32>, vector<2x2x8x64xf32> -> vector<2x2x8x128xf32>
    %84 = vector.shape_cast %83 : vector<2x2x8x128xf32> to vector<32x128xf32>
    %c0_45 = arith.constant 0 : index
    %c0_46 = arith.constant 0 : index
    %85 = vector.load %arg10[%c0_45, %c0_46] : memref<128x128xf32, #tpu.memory_space<vmem>>, vector<128x128xf32>
    %cst_47 = arith.constant dense<0.000000e+00> : vector<32x128xf32>
    %86 = tpu.matmul %84, %85, %cst_47 {dimension_numbers = #tpu.dot_dimension_numbers<[1], [0], [0], [1], [0, 0, 1, 1], [], []>} : vector<32x128xf32>, vector<128x128xf32>, vector<32x128xf32> -> vector<32x128xf32>
    %87 = tpu.concatenate %82, %86 in 0 : vector<32x128xf32>, vector<32x128xf32> -> vector<64x128xf32>
    %c0_48 = arith.constant 0 : index
    %c0_49 = arith.constant 0 : index
    %88 = vector.load %arg11[%c0_48, %c0_49] : memref<2x128xf32, #tpu.memory_space<vmem>>, vector<1x128xf32>
    %89 = vector.broadcast %88 : vector<1x128xf32> to vector<64x128xf32>
    %90 = arith.mulf %87, %89 : vector<64x128xf32>
    %c1_50 = arith.constant 1 : index
    %c0_51 = arith.constant 0 : index
    %91 = vector.load %arg11[%c1_50, %c0_51] : memref<2x128xf32, #tpu.memory_space<vmem>>, vector<1x128xf32>
    %92 = vector.broadcast %91 : vector<1x128xf32> to vector<64x128xf32>
    %93 = arith.addf %90, %92 : vector<64x128xf32>
    %cst_52 = arith.constant 0.000000e+00 : f32
    %94 = vector.broadcast %cst_52 : f32 to vector<64x128xf32>
    %95 = arith.maximumf %93, %94 : vector<64x128xf32>
    %c0_53 = arith.constant 0 : index
    %c0_54 = arith.constant 0 : index
    %96 = vector.load %arg12[%c0_53, %c0_54] : memref<128x128xf32, #tpu.memory_space<vmem>>, vector<128x128xf32>
    %cst_55 = arith.constant dense<0.000000e+00> : vector<64x128xf32>
    %97 = tpu.matmul %95, %96, %cst_55 {dimension_numbers = #tpu.dot_dimension_numbers<[1], [0], [0], [1], [0, 0, 1, 1], [], []>} : vector<64x128xf32>, vector<128x128xf32>, vector<64x128xf32> -> vector<64x128xf32>
    %c0_56 = arith.constant 0 : index
    %c0_57 = arith.constant 0 : index
    %98 = vector.load %arg13[%c0_56, %c0_57] : memref<2x128xf32, #tpu.memory_space<vmem>>, vector<1x128xf32>
    %99 = vector.broadcast %98 : vector<1x128xf32> to vector<64x128xf32>
    %100 = arith.mulf %97, %99 : vector<64x128xf32>
    %c1_58 = arith.constant 1 : index
    %c0_59 = arith.constant 0 : index
    %101 = vector.load %arg13[%c1_58, %c0_59] : memref<2x128xf32, #tpu.memory_space<vmem>>, vector<1x128xf32>
    %102 = vector.broadcast %101 : vector<1x128xf32> to vector<64x128xf32>
    %103 = arith.addf %100, %102 : vector<64x128xf32>
    %c0_60 = arith.constant 0 : index
    %c0_61 = arith.constant 0 : index
    %104 = vector.load %arg1[%c0_60, %c0_61] : memref<64x128xf32, #tpu.memory_space<vmem>>, vector<64x128xf32>
    %105 = arith.negf %103 : vector<64x128xf32>
    %106 = math.exp %105 : vector<64x128xf32>
    %cst_62 = arith.constant 1.000000e+00 : f32
    %107 = vector.broadcast %cst_62 : f32 to vector<64x128xf32>
    %108 = arith.addf %107, %106 : vector<64x128xf32>
    %109 = arith.divf %107, %108 : vector<64x128xf32>
    %110 = arith.mulf %104, %109 : vector<64x128xf32>
    %c0_63 = arith.constant 0 : index
    %c0_64 = arith.constant 0 : index
    %111 = vector.load %arg15[%c0_63, %c0_64] : memref<64x128xf32, #tpu.memory_space<vmem>>, vector<64x128xf32>
    tpu.vector_store %arg15[%c0_63, %c0_64], %110 {strides = array<i32>} : memref<64x128xf32, #tpu.memory_space<vmem>>, vector<64x128xf32>,
    return
  }
}

</mosaic_0001>

<llo_original>
// kernel: decoder_forward.1
$region0: #{decoder_forward.1}
  #allocation0 [shape = 'u32[]', space=smem, size = 0x4, offset = 0x4, fixed_abs, tag = 'smem constant byte address 0x4 - core index']
  #allocation1 [shape = 'u32[144,128]{1,0:T(1,128)}', space=vmem, size = 0x12000, scoped, tag = 'internal scratch']
  %s0 = inlined_call_operand.vmem [shape: f32[2,8,64], index: 0, kind: input, shape index: {}]
  %s1 = inlined_call_operand.vmem [shape: f32[64,128], index: 1, kind: input, shape index: {}]
  %s2 = inlined_call_operand.vmem [shape: f32[192,64], index: 2, kind: input, shape index: {}]
  %s3 = inlined_call_operand.vmem [shape: f32[2,64], index: 3, kind: input, shape index: {}]
  %s4 = inlined_call_operand.vmem [shape: f32[192,64], index: 4, kind: input, shape index: {}]
  %s5 = inlined_call_operand.vmem [shape: f32[2,64], index: 5, kind: input, shape index: {}]
  %s6 = inlined_call_operand.vmem [shape: f32[64,64], index: 6, kind: input, shape index: {}]
  %s7 = inlined_call_operand.vmem [shape: f32[128,64], index: 7, kind: input, shape index: {}]
  %s8 = inlined_call_operand.vmem [shape: f32[2,64], index: 8, kind: input, shape index: {}]
  %s9 = inlined_call_operand.vmem [shape: f32[64,128], index: 9, kind: input, shape index: {}]
  %s10 = inlined_call_operand.vmem [shape: f32[128,128], index: 10, kind: input, shape index: {}]
  %s11 = inlined_call_operand.vmem [shape: f32[2,128], index: 11, kind: input, shape index: {}]
  %s12 = inlined_call_operand.vmem [shape: f32[128,128], index: 12, kind: input, shape index: {}]
  %s13 = inlined_call_operand.vmem [shape: f32[2,128], index: 13, kind: input, shape index: {}]
  %s14 = inlined_call_operand.vmem [shape: f32[2,2,8,64], index: 14, kind: output, shape index: {0}]
  %s15 = inlined_call_operand.vmem [shape: f32[64,128], index: 15, kind: output, shape index: {1}]
  %16 = xla_tuple %s14, %s15
  %s17 = sld [smem:[#allocation0]]
  $region74: #{decoder_forward.1} parent=0
    _
  %s19 = ssub.s32 1, %s17
  %s20 = scalar_select 0, %s19, %s17
  // Predicated region
  $region2: #{decoder_forward.1} parent=0 // pred_check
    _
  $region3: #{decoder_forward.1} parent=0 // pred_check_branch
    %22 = sbr.rel (0) target = $region5
  $region4: #{decoder_forward.1} parent=0 // pred_region
    _
  $region5: #{decoder_forward.1} parent=0 // pred_fallthru
    _
  // Predicated region
  $region6: #{decoder_forward.1} parent=0 // pred_check
    _
  $region7: #{decoder_forward.1} parent=0 // pred_check_branch
    %24 = sbr.rel (0) target = $region9
  $region8: #{decoder_forward.1} parent=0 // pred_region
    _
  $region9: #{decoder_forward.1} parent=0 // pred_fallthru
    _
  // Predicated region
  $region10: #{decoder_forward.1} parent=0 // pred_check
    _
  $region11: #{decoder_forward.1} parent=0 // pred_check_branch
    %26 = sbr.rel (0) target = $region13
  $region12: #{decoder_forward.1} parent=0 // pred_region
    _
  $region13: #{decoder_forward.1} parent=0 // pred_fallthru
    _
  // Predicated region
  $region14: #{decoder_forward.1} parent=0 // pred_check
    _
  $region15: #{decoder_forward.1} parent=0 // pred_check_branch
    %28 = sbr.rel (0) target = $region17
  $region16: #{decoder_forward.1} parent=0 // pred_region
    _
  $region17: #{decoder_forward.1} parent=0 // pred_fallthru
    _
  // Predicated region
  $region18: #{decoder_forward.1} parent=0 // pred_check
    _
  $region19: #{decoder_forward.1} parent=0 // pred_check_branch
    %30 = sbr.rel (0) target = $region21
  $region20: #{decoder_forward.1} parent=0 // pred_region
    _
  $region21: #{decoder_forward.1} parent=0 // pred_fallthru
    _
  // Predicated region
  $region22: #{decoder_forward.1} parent=0 // pred_check
    _
  $region23: #{decoder_forward.1} parent=0 // pred_check_branch
    %32 = sbr.rel (0) target = $region25
  $region24: #{decoder_forward.1} parent=0 // pred_region
    _
  $region25: #{decoder_forward.1} parent=0 // pred_fallthru
    _
  // Predicated region
  $region26: #{decoder_forward.1} parent=0 // pred_check
    _
  $region27: #{decoder_forward.1} parent=0 // pred_check_branch
    %34 = sbr.rel (0) target = $region29
  $region28: #{decoder_forward.1} parent=0 // pred_region
    _
  $region29: #{decoder_forward.1} parent=0 // pred_fallthru
    _
  // Predicated region
  $region30: #{decoder_forward.1} parent=0 // pred_check
    _
  $region31: #{decoder_forward.1} parent=0 // pred_check_branch
    %36 = sbr.rel (0) target = $region33
  $region32: #{decoder_forward.1} parent=0 // pred_region
    _
  $region33: #{decoder_forward.1} parent=0 // pred_fallthru
    _
  // Predicated region
  $region34: #{decoder_forward.1} parent=0 // pred_check
    _
  $region35: #{decoder_forward.1} parent=0 // pred_check_branch
    %38 = sbr.rel (0) target = $region37
  $region36: #{decoder_forward.1} parent=0 // pred_region
    _
  $region37: #{decoder_forward.1} parent=0 // pred_fallthru
    _
  // Predicated region
  $region38: #{decoder_forward.1} parent=0 // pred_check
    _
  $region39: #{decoder_forward.1} parent=0 // pred_check_branch
    %40 = sbr.rel (0) target = $region41
  $region40: #{decoder_forward.1} parent=0 // pred_region
    _
  $region41: #{decoder_forward.1} parent=0 // pred_fallthru
    _
  // Predicated region
  $region42: #{decoder_forward.1} parent=0 // pred_check
    _
  $region43: #{decoder_forward.1} parent=0 // pred_check_branch
    %42 = sbr.rel (0) target = $region45
  $region44: #{decoder_forward.1} parent=0 // pred_region
    _
  $region45: #{decoder_forward.1} parent=0 // pred_fallthru
    _
  // Predicated region
  $region46: #{decoder_forward.1} parent=0 // pred_check
    _
  $region47: #{decoder_forward.1} parent=0 // pred_check_branch
    %44 = sbr.rel (0) target = $region49
  $region48: #{decoder_forward.1} parent=0 // pred_region
    _
  $region49: #{decoder_forward.1} parent=0 // pred_fallthru
    _
  // Predicated region
  $region50: #{decoder_forward.1} parent=0 // pred_check
    _
  $region51: #{decoder_forward.1} parent=0 // pred_check_branch
    %46 = sbr.rel (0) target = $region53
  $region52: #{decoder_forward.1} parent=0 // pred_region
    _
  $region53: #{decoder_forward.1} parent=0 // pred_fallthru
    _
  // Predicated region
  $region54: #{decoder_forward.1} parent=0 // pred_check
    _
  $region55: #{decoder_forward.1} parent=0 // pred_check_branch
    %48 = sbr.rel (0) target = $region57
  $region56: #{decoder_forward.1} parent=0 // pred_region
    _
  $region57: #{decoder_forward.1} parent=0 // pred_fallthru
    _
  %v49 = vld [vmem:[%s0] sm:$0xff]
  %v50 = vld [vmem:[%s0 + $0x8] sm:$0xff]
  %v53 = vrot.slane %v49, 7
  %v54 = vrot.slane %v50, 7
  %vm57 = vcmask 1040384
  %v58 = vsel %vm57, 0.0, %v53
  %v59 = vsel %vm57, 0.0, %v54
  %v60 = vrot.slane %v49, 1
  %v61 = vrot.slane %v50, 1
  %vm64 = vcmask 1046528
  %v65 = vsel %vm64, %v60, 0.0
  %v66 = vsel %vm64, %v61, 0.0
  %67 = vrot.lane.b32.xlu0 %v49, 64
  %v68 = vpop.permute.xlu0 %67
  %69 = vrot.lane.b32.xlu0 %v50, 64
  %v70 = vpop.permute.xlu0 %69
  %vm73 = vcmask 523264
  %v74 = vsel %vm73, %v58, %v68
  %v75 = vsel %vm73, %v59, %v70
  %v76 = vld [vmem:[%s2] sm:$0xff]
  %v77 = vld [vmem:[%s2 + $0x8] sm:$0xff]
  %v78 = vld [vmem:[%s2 + $0x10] sm:$0xff]
  %v79 = vld [vmem:[%s2 + $0x18] sm:$0xff]
  %v80 = vld [vmem:[%s2 + $0x20] sm:$0xff]
  %v81 = vld [vmem:[%s2 + $0x28] sm:$0xff]
  %v82 = vld [vmem:[%s2 + $0x30] sm:$0xff]
  %v83 = vld [vmem:[%s2 + $0x38] sm:$0xff]
  %v84 = vld [vmem:[%s2 + $0x40] sm:$0xff]
  %v85 = vld [vmem:[%s2 + $0x48] sm:$0xff]
  %v86 = vld [vmem:[%s2 + $0x50] sm:$0xff]
  %v87 = vld [vmem:[%s2 + $0x58] sm:$0xff]
  %v88 = vld [vmem:[%s2 + $0x60] sm:$0xff]
  %v89 = vld [vmem:[%s2 + $0x68] sm:$0xff]
  %v90 = vld [vmem:[%s2 + $0x70] sm:$0xff]
  %v91 = vld [vmem:[%s2 + $0x78] sm:$0xff]
  %v92 = vld [vmem:[%s2 + $0x80] sm:$0xff]
  %v93 = vld [vmem:[%s2 + $0x88] sm:$0xff]
  %v94 = vld [vmem:[%s2 + $0x90] sm:$0xff]
  %v95 = vld [vmem:[%s2 + $0x98] sm:$0xff]
  %v96 = vld [vmem:[%s2 + $0xa0] sm:$0xff]
  %v97 = vld [vmem:[%s2 + $0xa8] sm:$0xff]
  %v98 = vld [vmem:[%s2 + $0xb0] sm:$0xff]
  %v99 = vld [vmem:[%s2 + $0xb8] sm:$0xff]
  %v101 = vsel %vm73, %v65, 0
  %v104 = vsel %vm73, %v66, 0
  %106 = vmatprep.subr.mxu0 0.0
  %107 = vmatpush1.msra.mxu0 %v76
  %108 = vmatprep.subr.mxu0 0.0
  %109 = vmatpush1.msra.mxu0 %v77
  %110 = vmatprep.subr.mxu0 0.0
  %111 = vmatpush1.msra.mxu0 %v78
  %112 = vmatprep.subr.mxu0 0.0
  %113 = vmatpush1.msra.mxu0 %v79
  %114 = vmatprep.subr.mxu0 0.0
  %115 = vmatpush1.msra.mxu0 %v80
  %116 = vmatprep.subr.mxu0 0.0
  %117 = vmatpush1.msra.mxu0 %v81
  %118 = vmatprep.subr.mxu0 0.0
  %119 = vmatpush1.msra.mxu0 %v82
  %120 = vmatprep.subr.mxu0 0.0
  %121 = vmatpush1.msra.mxu0 %v83
  %122 = vmatprep.subr.mxu0 0.0
  %123 = vmatpush1.msra.mxu0 %v84
  %124 = vmatprep.subr.mxu0 0.0
  %125 = vmatpush1.msra.mxu0 %v85
  %126 = vmatprep.subr.mxu0 0.0
  %127 = vmatpush1.msra.mxu0 %v86
  %128 = vmatprep.subr.mxu0 0.0
  %129 = vmatpush1.msra.mxu0 %v87
  %130 = vmatprep.subr.mxu0 0.0
  %131 = vmatpush1.msra.mxu0 %v88
  %132 = vmatprep.subr.mxu0 0.0
  %133 = vmatpush1.msra.mxu0 %v89
  %134 = vmatprep.subr.mxu0 0.0
  %135 = vmatpush1.msra.mxu0 %v90
  %136 = vmatprep.subr.mxu0 0.0
  %137 = vmatpush1.msra.mxu0 %v91
  %138 = vmatprep.subr.mxu0 0.0
  %139 = vmatpush1.msra.mxu0 %v92
  %140 = vmatprep.subr.mxu0 0.0
  %141 = vmatpush1.msra.mxu0 %v93
  %142 = vmatprep.subr.mxu0 0.0
  %143 = vmatpush1.msra.mxu0 %v94
  %144 = vmatprep.subr.mxu0 0.0
  %145 = vmatpush1.msra.mxu0 %v95
  %146 = vmatprep.subr.mxu0 0.0
  %147 = vmatpush1.msra.mxu0 %v96
  %148 = vmatprep.subr.mxu0 0.0
  %149 = vmatpush1.msra.mxu0 %v97
  %150 = vmatprep.subr.mxu0 0.0
  %151 = vmatpush1.msra.mxu0 %v98
  %152 = vmatprep.subr.mxu0 0.0
  %153 = vmatpush1.msra.mxu0 %v99
  %154 = vmatprep.subr.mxu0 0.0
  %155 = vmatpush1.msra.mxu0 0.0
  %156 = vmatprep.subr.mxu0 0.0
  %157 = vmatpush1.msra.mxu0 0.0
  %158 = vmatprep.subr.mxu0 0.0
  %159 = vmatpush1.msra.mxu0 0.0
  %160 = vmatprep.subr.mxu0 0.0
  %161 = vmatpush1.msra.mxu0 0.0
  %162 = vmatprep.subr.mxu0 0.0
  %163 = vmatpush1.msra.mxu0 0.0
  %164 = vmatprep.subr.mxu0 0.0
  %165 = vmatpush1.msra.mxu0 0.0
  %166 = vmatprep.subr.mxu0 0.0
  %167 = vmatpush1.msra.mxu0 0.0
  %168 = vmatprep.subr.mxu0 0.0
  %169 = vmatpush1.msra.mxu0 0.0
  %170 = vmatprep.mubr.f32.mxu0 %v101
  %171 = vmatmul.mubr.f32.gmra.mrb[0].mxu0 %v74
  %v172 = vpop.f32.mrb[0].mxu0
  %v173 = vadd.f32 0.0, %v172
  %v174 = vpop.f32.mrb[0].mxu0
  %175 = vmatprep.mubr.f32.mxu0 %v104
  %176 = vmatmul.mubr.f32.gmra.mrb[0].mxu0 %v75
  %v177 = vpop.f32.mrb[0].mxu0
  %v178 = vadd.f32 0.0, %v177
  %v179 = vpop.f32.mrb[0].mxu0
  %180 = vdwg.mxu0
  %v181 = vld [vmem:[%s3] sm:$0x1]
  %v182 = vlaneseq
  %v183 = vshrl.u32 %v182, 7
  %v184 = vsub.s32 0, %v183
  %v185 = vrot.slane %v181, %v184
  %v186 = vmul.f32 %v173, %v185
  %v187 = vmul.f32 %v178, %v185
  %v188 = vld [vmem:[%s3 + $0x1] sm:$0x1]
  %v189 = vlaneseq
  %v190 = vshrl.u32 %v189, 7
  %v191 = vsub.s32 0, %v190
  %v192 = vrot.slane %v188, %v191
  %v193 = vadd.f32 %v186, %v192
  %v194 = vadd.f32 %v187, %v192
  %v195 = vmax.f32 %v193, 0.0
  %v196 = vmax.f32 %v194, 0.0
  %v199 = vrot.slane %v195, 7
  %v200 = vrot.slane %v196, 7
  %v203 = vsel %vm57, 0.0, %v199
  %v204 = vsel %vm57, 0.0, %v200
  %v205 = vrot.slane %v195, 1
  %v206 = vrot.slane %v196, 1
  %v209 = vsel %vm64, %v205, 0.0
  %v210 = vsel %vm64, %v206, 0.0
  %211 = vrot.lane.b32.xlu0 %v195, 64
  %v212 = vpop.permute.xlu0 %211
  %213 = vrot.lane.b32.xlu0 %v196, 64
  %v214 = vpop.permute.xlu0 %213
  %v217 = vsel %vm73, %v203, %v212
  %v218 = vsel %vm73, %v204, %v214
  %v219 = vld [vmem:[%s4] sm:$0xff]
  %v220 = vld [vmem:[%s4 + $0x8] sm:$0xff]
  %v221 = vld [vmem:[%s4 + $0x10] sm:$0xff]
  %v222 = vld [vmem:[%s4 + $0x18] sm:$0xff]
  %v223 = vld [vmem:[%s4 + $0x20] sm:$0xff]
  %v224 = vld [vmem:[%s4 + $0x28] sm:$0xff]
  %v225 = vld [vmem:[%s4 + $0x30] sm:$0xff]
  %v226 = vld [vmem:[%s4 + $0x38] sm:$0xff]
  %v227 = vld [vmem:[%s4 + $0x40] sm:$0xff]
  %v228 = vld [vmem:[%s4 + $0x48] sm:$0xff]
  %v229 = vld [vmem:[%s4 + $0x50] sm:$0xff]
  %v230 = vld [vmem:[%s4 + $0x58] sm:$0xff]
  %v231 = vld [vmem:[%s4 + $0x60] sm:$0xff]
  %v232 = vld [vmem:[%s4 + $0x68] sm:$0xff]
  %v233 = vld [vmem:[%s4 + $0x70] sm:$0xff]
  %v234 = vld [vmem:[%s4 + $0x78] sm:$0xff]
  %v235 = vld [vmem:[%s4 + $0x80] sm:$0xff]
  %v236 = vld [vmem:[%s4 + $0x88] sm:$0xff]
  %v237 = vld [vmem:[%s4 + $0x90] sm:$0xff]
  %v238 = vld [vmem:[%s4 + $0x98] sm:$0xff]
  %v239 = vld [vmem:[%s4 + $0xa0] sm:$0xff]
  %v240 = vld [vmem:[%s4 + $0xa8] sm:$0xff]
  %v241 = vld [vmem:[%s4 + $0xb0] sm:$0xff]
  %v242 = vld [vmem:[%s4 + $0xb8] sm:$0xff]
  %v244 = vsel %vm73, %v209, 0
  %v247 = vsel %vm73, %v210, 0
  %249 = vmatprep.subr.mxu0 0.0
  %250 = vmatpush1.msra.mxu0 %v219
  %251 = vmatprep.subr.mxu0 0.0
  %252 = vmatpush1.msra.mxu0 %v220
  %253 = vmatprep.subr.mxu0 0.0
  %254 = vmatpush1.msra.mxu0 %v221
  %255 = vmatprep.subr.mxu0 0.0
  %256 = vmatpush1.msra.mxu0 %v222
  %257 = vmatprep.subr.mxu0 0.0
  %258 = vmatpush1.msra.mxu0 %v223
  %259 = vmatprep.subr.mxu0 0.0
  %260 = vmatpush1.msra.mxu0 %v224
  %261 = vmatprep.subr.mxu0 0.0
  %262 = vmatpush1.msra.mxu0 %v225
  %263 = vmatprep.subr.mxu0 0.0
  %264 = vmatpush1.msra.mxu0 %v226
  %265 = vmatprep.subr.mxu0 0.0
  %266 = vmatpush1.msra.mxu0 %v227
  %267 = vmatprep.subr.mxu0 0.0
  %268 = vmatpush1.msra.mxu0 %v228
  %269 = vmatprep.subr.mxu0 0.0
  %270 = vmatpush1.msra.mxu0 %v229
  %271 = vmatprep.subr.mxu0 0.0
  %272 = vmatpush1.msra.mxu0 %v230
  %273 = vmatprep.subr.mxu0 0.0
  %274 = vmatpush1.msra.mxu0 %v231
  %275 = vmatprep.subr.mxu0 0.0
  %276 = vmatpush1.msra.mxu0 %v232
  %277 = vmatprep.subr.mxu0 0.0
  %278 = vmatpush1.msra.mxu0 %v233
  %279 = vmatprep.subr.mxu0 0.0
  %280 = vmatpush1.msra.mxu0 %v234
  %281 = vmatprep.subr.mxu0 0.0
  %282 = vmatpush1.msra.mxu0 %v235
  %283 = vmatprep.subr.mxu0 0.0
  %284 = vmatpush1.msra.mxu0 %v236
  %285 = vmatprep.subr.mxu0 0.0
  %286 = vmatpush1.msra.mxu0 %v237
  %287 = vmatprep.subr.mxu0 0.0
  %288 = vmatpush1.msra.mxu0 %v238
  %289 = vmatprep.subr.mxu0 0.0
  %290 = vmatpush1.msra.mxu0 %v239
  %291 = vmatprep.subr.mxu0 0.0
  %292 = vmatpush1.msra.mxu0 %v240
  %293 = vmatprep.subr.mxu0 0.0
  %294 = vmatpush1.msra.mxu0 %v241
  %295 = vmatprep.subr.mxu0 0.0
  %296 = vmatpush1.msra.mxu0 %v242
  %297 = vmatprep.subr.mxu0 0.0
  %298 = vmatpush1.msra.mxu0 0.0
  %299 = vmatprep.subr.mxu0 0.0
  %300 = vmatpush1.msra.mxu0 0.0
  %301 = vmatprep.subr.mxu0 0.0
  %302 = vmatpush1.msra.mxu0 0.0
  %303 = vmatprep.subr.mxu0 0.0
  %304 = vmatpush1.msra.mxu0 0.0
  %305 = vmatprep.subr.mxu0 0.0
  %306 = vmatpush1.msra.mxu0 0.0
  %307 = vmatprep.subr.mxu0 0.0
  %308 = vmatpush1.msra.mxu0 0.0
  %309 = vmatprep.subr.mxu0 0.0
  %310 = vmatpush1.msra.mxu0 0.0
  %311 = vmatprep.subr.mxu0 0.0
  %312 = vmatpush1.msra.mxu0 0.0
  %313 = vmatprep.mubr.f32.mxu0 %v244
  %314 = vmatmul.mubr.f32.gmra.mrb[0].mxu0 %v217
  %v315 = vpop.f32.mrb[0].mxu0
  %v316 = vadd.f32 0.0, %v315
  %v317 = vpop.f32.mrb[0].mxu0
  %318 = vmatprep.mubr.f32.mxu0 %v247
  %319 = vmatmul.mubr.f32.gmra.mrb[0].mxu0 %v218
  %v320 = vpop.f32.mrb[0].mxu0
  %v321 = vadd.f32 0.0, %v320
  %v322 = vpop.f32.mrb[0].mxu0
  %323 = vdwg.mxu0
  %v324 = vld [vmem:[%s5] sm:$0x1]
  %v325 = vlaneseq
  %v326 = vshrl.u32 %v325, 7
  %v327 = vsub.s32 0, %v326
  %v328 = vrot.slane %v324, %v327
  %v329 = vmul.f32 %v316, %v328
  %v330 = vmul.f32 %v321, %v328
  %v331 = vld [vmem:[%s5 + $0x1] sm:$0x1]
  %v332 = vlaneseq
  %v333 = vshrl.u32 %v332, 7
  %v334 = vsub.s32 0, %v333
  %v335 = vrot.slane %v331, %v334
  %v336 = vadd.f32 %v329, %v335
  %v337 = vadd.f32 %v330, %v335
  %v338 = vmax.f32 %v336, 0.0
  %v339 = vmax.f32 %v337, 0.0
  %v340 = vld [vmem:[%s6] sm:$0xff]
  %v341 = vld [vmem:[%s6 + $0x8] sm:$0xff]
  %v342 = vld [vmem:[%s6 + $0x10] sm:$0xff]
  %v343 = vld [vmem:[%s6 + $0x18] sm:$0xff]
  %v344 = vld [vmem:[%s6 + $0x20] sm:$0xff]
  %v345 = vld [vmem:[%s6 + $0x28] sm:$0xff]
  %v346 = vld [vmem:[%s6 + $0x30] sm:$0xff]
  %v347 = vld [vmem:[%s6 + $0x38] sm:$0xff]
  %v349 = vsel %vm73, %v338, 0
  %v352 = vsel %vm73, %v339, 0
  %354 = vmatprep.subr.mxu0 0.0
  %355 = vmatpush1.msra.mxu0 %v340
  %356 = vmatprep.subr.mxu0 0.0
  %357 = vmatpush1.msra.mxu0 %v341
  %358 = vmatprep.subr.mxu0 0.0
  %359 = vmatpush1.msra.mxu0 %v342
  %360 = vmatprep.subr.mxu0 0.0
  %361 = vmatpush1.msra.mxu0 %v343
  %362 = vmatprep.subr.mxu0 0.0
  %363 = vmatpush1.msra.mxu0 %v344
  %364 = vmatprep.subr.mxu0 0.0
  %365 = vmatpush1.msra.mxu0 %v345
  %366 = vmatprep.subr.mxu0 0.0
  %367 = vmatpush1.msra.mxu0 %v346
  %368 = vmatprep.subr.mxu0 0.0
  %369 = vmatpush1.msra.mxu0 %v347
  %370 = vmatprep.subr.mxu0 0.0
  %371 = vmatpush1.msra.mxu0 0.0
  %372 = vmatprep.subr.mxu0 0.0
  %373 = vmatpush1.msra.mxu0 0.0
  %374 = vmatprep.subr.mxu0 0.0
  %375 = vmatpush1.msra.mxu0 0.0
  %376 = vmatprep.subr.mxu0 0.0
  %377 = vmatpush1.msra.mxu0 0.0
  %378 = vmatprep.subr.mxu0 0.0
  %379 = vmatpush1.msra.mxu0 0.0
  %380 = vmatprep.subr.mxu0 0.0
  %381 = vmatpush1.msra.mxu0 0.0
  %382 = vmatprep.subr.mxu0 0.0
  %383 = vmatpush1.msra.mxu0 0.0
  %384 = vmatprep.subr.mxu0 0.0
  %385 = vmatpush1.msra.mxu0 0.0
  %386 = vmatprep.subr.mxu0 0.0
  %387 = vmatpush1.msra.mxu0 0.0
  %388 = vmatprep.subr.mxu0 0.0
  %389 = vmatpush1.msra.mxu0 0.0
  %390 = vmatprep.subr.mxu0 0.0
  %391 = vmatpush1.msra.mxu0 0.0
  %392 = vmatprep.subr.mxu0 0.0
  %393 = vmatpush1.msra.mxu0 0.0
  %394 = vmatprep.subr.mxu0 0.0
  %395 = vmatpush1.msra.mxu0 0.0
  %396 = vmatprep.subr.mxu0 0.0
  %397 = vmatpush1.msra.mxu0 0.0
  %398 = vmatprep.subr.mxu0 0.0
  %399 = vmatpush1.msra.mxu0 0.0
  %400 = vmatprep.subr.mxu0 0.0
  %401 = vmatpush1.msra.mxu0 0.0
  %402 = vmatprep.subr.mxu0 0.0
  %403 = vmatpush1.msra.mxu0 0.0
  %404 = vmatprep.subr.mxu0 0.0
  %405 = vmatpush1.msra.mxu0 0.0
  %406 = vmatprep.subr.mxu0 0.0
  %407 = vmatpush1.msra.mxu0 0.0
  %408 = vmatprep.subr.mxu0 0.0
  %409 = vmatpush1.msra.mxu0 0.0
  %410 = vmatprep.subr.mxu0 0.0
  %411 = vmatpush1.msra.mxu0 0.0
  %412 = vmatprep.subr.mxu0 0.0
  %413 = vmatpush1.msra.mxu0 0.0
  %414 = vmatprep.subr.mxu0 0.0
  %415 = vmatpush1.msra.mxu0 0.0
  %416 = vmatprep.subr.mxu0 0.0
  %417 = vmatpush1.msra.mxu0 0.0
  %418 = vmatprep.mubr.f32.mxu0 0.0
  %419 = vmatmul.mubr.f32.gmra.mrb[0].mxu0 %v349
  %v420 = vpop.f32.mrb[0].mxu0
  %v421 = vadd.f32 0.0, %v420
  %v422 = vpop.f32.mrb[0].mxu0
  %423 = vmatprep.mubr.f32.mxu0 0.0
  %424 = vmatmul.mubr.f32.gmra.mrb[0].mxu0 %v352
  %v425 = vpop.f32.mrb[0].mxu0
  %v426 = vadd.f32 0.0, %v425
  %v427 = vpop.f32.mrb[0].mxu0
  %428 = vdwg.mxu0
  %v429 = vld [vmem:[%s8] sm:$0x1]
  %v430 = vlaneseq
  %v431 = vshrl.u32 %v430, 7
  %v432 = vsub.s32 0, %v431
  %v433 = vrot.slane %v429, %v432
  %v434 = vmul.f32 %v421, %v433
  %v435 = vmul.f32 %v426, %v433
  %v436 = vld [vmem:[%s8 + $0x1] sm:$0x1]
  %v437 = vlaneseq
  %v438 = vshrl.u32 %v437, 7
  %v439 = vsub.s32 0, %v438
  %v440 = vrot.slane %v436, %v439
  %v441 = vadd.f32 %v434, %v440
  %v442 = vadd.f32 %v435, %v440
  %v443 = vmax.f32 %v441, 0.0
  %v444 = vmax.f32 %v442, 0.0
  %v445 = vrot.slane %v338, 1
  %v446 = vrot.slane %v339, 1
  %v449 = vsel %vm64, %v445, 0.0
  %v450 = vsel %vm64, %v446, 0.0
  %453 = vrot.lane.b32.xlu0 %v449, 64
  %v454 = vpop.permute.xlu0 %453
  %455 = vrot.lane.b32.xlu0 %v450, 64
  %v456 = vpop.permute.xlu0 %455
  %v459 = vsel %vm73, %v338, %v454
  %v460 = vsel %vm73, %v339, %v456
  %v461 = vld [vmem:[%s7] sm:$0xff]
  %v462 = vld [vmem:[%s7 + $0x8] sm:$0xff]
  %v463 = vld [vmem:[%s7 + $0x10] sm:$0xff]
  %v464 = vld [vmem:[%s7 + $0x18] sm:$0xff]
  %v465 = vld [vmem:[%s7 + $0x20] sm:$0xff]
  %v466 = vld [vmem:[%s7 + $0x28] sm:$0xff]
  %v467 = vld [vmem:[%s7 + $0x30] sm:$0xff]
  %v468 = vld [vmem:[%s7 + $0x38] sm:$0xff]
  %v469 = vld [vmem:[%s7 + $0x40] sm:$0xff]
  %v470 = vld [vmem:[%s7 + $0x48] sm:$0xff]
  %v471 = vld [vmem:[%s7 + $0x50] sm:$0xff]
  %v472 = vld [vmem:[%s7 + $0x58] sm:$0xff]
  %v473 = vld [vmem:[%s7 + $0x60] sm:$0xff]
  %v474 = vld [vmem:[%s7 + $0x68] sm:$0xff]
  %v475 = vld [vmem:[%s7 + $0x70] sm:$0xff]
  %v476 = vld [vmem:[%s7 + $0x78] sm:$0xff]
  %477 = vmatprep.subr.mxu0 0.0
  %478 = vmatpush1.msra.mxu0 %v461
  %479 = vmatprep.subr.mxu0 0.0
  %480 = vmatpush1.msra.mxu0 %v462
  %481 = vmatprep.subr.mxu0 0.0
  %482 = vmatpush1.msra.mxu0 %v463
  %483 = vmatprep.subr.mxu0 0.0
  %484 = vmatpush1.msra.mxu0 %v464
  %485 = vmatprep.subr.mxu0 0.0
  %486 = vmatpush1.msra.mxu0 %v465
  %487 = vmatprep.subr.mxu0 0.0
  %488 = vmatpush1.msra.mxu0 %v466
  %489 = vmatprep.subr.mxu0 0.0
  %490 = vmatpush1.msra.mxu0 %v467
  %491 = vmatprep.subr.mxu0 0.0
  %492 = vmatpush1.msra.mxu0 %v468
  %493 = vmatprep.subr.mxu0 0.0
  %494 = vmatpush1.msra.mxu0 %v469
  %495 = vmatprep.subr.mxu0 0.0
  %496 = vmatpush1.msra.mxu0 %v470
  %497 = vmatprep.subr.mxu0 0.0
  %498 = vmatpush1.msra.mxu0 %v471
  %499 = vmatprep.subr.mxu0 0.0
  %500 = vmatpush1.msra.mxu0 %v472
  %501 = vmatprep.subr.mxu0 0.0
  %502 = vmatpush1.msra.mxu0 %v473
  %503 = vmatprep.subr.mxu0 0.0
  %504 = vmatpush1.msra.mxu0 %v474
  %505 = vmatprep.subr.mxu0 0.0
  %506 = vmatpush1.msra.mxu0 %v475
  %507 = vmatprep.subr.mxu0 0.0
  %508 = vmatpush1.msra.mxu0 %v476
  %509 = vmatprep.subr.mxu0 0.0
  %510 = vmatpush1.msra.mxu0 0.0
  %511 = vmatprep.subr.mxu0 0.0
  %512 = vmatpush1.msra.mxu0 0.0
  %513 = vmatprep.subr.mxu0 0.0
  %514 = vmatpush1.msra.mxu0 0.0
  %515 = vmatprep.subr.mxu0 0.0
  %516 = vmatpush1.msra.mxu0 0.0
  %517 = vmatprep.subr.mxu0 0.0
  %518 = vmatpush1.msra.mxu0 0.0
  %519 = vmatprep.subr.mxu0 0.0
  %520 = vmatpush1.msra.mxu0 0.0
  %521 = vmatprep.subr.mxu0 0.0
  %522 = vmatpush1.msra.mxu0 0.0
  %523 = vmatprep.subr.mxu0 0.0
  %524 = vmatpush1.msra.mxu0 0.0
  %525 = vmatprep.subr.mxu0 0.0
  %526 = vmatpush1.msra.mxu0 0.0
  %527 = vmatprep.subr.mxu0 0.0
  %528 = vmatpush1.msra.mxu0 0.0
  %529 = vmatprep.subr.mxu0 0.0
  %530 = vmatpush1.msra.mxu0 0.0
  %531 = vmatprep.subr.mxu0 0.0
  %532 = vmatpush1.msra.mxu0 0.0
  %533 = vmatprep.subr.mxu0 0.0
  %534 = vmatpush1.msra.mxu0 0.0
  %535 = vmatprep.subr.mxu0 0.0
  %536 = vmatpush1.msra.mxu0 0.0
  %537 = vmatprep.subr.mxu0 0.0
  %538 = vmatpush1.msra.mxu0 0.0
  %539 = vmatprep.subr.mxu0 0.0
  %540 = vmatpush1.msra.mxu0 0.0
  %541 = vmatprep.mubr.f32.mxu0 0.0
  %542 = vmatmul.mubr.f32.gmra.mrb[0].mxu0 %v459
  %v543 = vpop.f32.mrb[0].mxu0
  %v544 = vadd.f32 0.0, %v543
  %v545 = vpop.f32.mrb[0].mxu0
  %546 = vmatprep.mubr.f32.mxu0 0.0
  %547 = vmatmul.mubr.f32.gmra.mrb[0].mxu0 %v460
  %v548 = vpop.f32.mrb[0].mxu0
  %v549 = vadd.f32 0.0, %v548
  %v550 = vpop.f32.mrb[0].mxu0
  %551 = vdwg.mxu0
  %v552 = vmul.f32 %v544, %v433
  %v553 = vmul.f32 %v549, %v433
  %v554 = vadd.f32 %v552, %v440
  %v555 = vadd.f32 %v553, %v440
  %v556 = vmax.f32 %v554, 0.0
  %v557 = vmax.f32 %v555, 0.0
  %558 = vst.msk [vmem:[%s14] sm:$0xff] %vm73, %v443
  %559 = vst.msk [vmem:[%s14 + $0x8] sm:$0xff] %vm73, %v444
  %560 = vst.msk [vmem:[%s14 + $0x10] sm:$0xff] %vm73, %v556
  %561 = vst.msk [vmem:[%s14 + $0x18] sm:$0xff] %vm73, %v557
  %v564 = vrot.slane %v443, 1
  %v565 = vrot.slane %v444, 1
  %v568 = vsel %vm64, %v564, 0.0
  %v569 = vsel %vm64, %v565, 0.0
  %v570 = vld [vmem:[%s9] sm:$0xff]
  %v571 = vld [vmem:[%s9 + $0x8] sm:$0xff]
  %v572 = vld [vmem:[%s9 + $0x10] sm:$0xff]
  %v573 = vld [vmem:[%s9 + $0x18] sm:$0xff]
  %v574 = vld [vmem:[%s9 + $0x20] sm:$0xff]
  %v575 = vld [vmem:[%s9 + $0x28] sm:$0xff]
  %v576 = vld [vmem:[%s9 + $0x30] sm:$0xff]
  %v577 = vld [vmem:[%s9 + $0x38] sm:$0xff]
  %v578 = vsel %vm73, %v443, 0
  %v581 = vsel %vm73, %v556, 0
  %v583 = vsel %vm73, %v444, 0
  %v586 = vsel %vm73, %v557, 0
  %588 = vmatprep.subr.mxu0 0.0
  %589 = vmatpush1.msra.mxu0 %v570
  %590 = vmatprep.subr.mxu0 0.0
  %591 = vmatpush1.msra.mxu0 %v571
  %592 = vmatprep.subr.mxu0 0.0
  %593 = vmatpush1.msra.mxu0 %v572
  %594 = vmatprep.subr.mxu0 0.0
  %595 = vmatpush1.msra.mxu0 %v573
  %596 = vmatprep.subr.mxu0 0.0
  %597 = vmatpush1.msra.mxu0 %v574
  %598 = vmatprep.subr.mxu0 0.0
  %599 = vmatpush1.msra.mxu0 %v575
  %600 = vmatprep.subr.mxu0 0.0
  %601 = vmatpush1.msra.mxu0 %v576
  %602 = vmatprep.subr.mxu0 0.0
  %603 = vmatpush1.msra.mxu0 %v577
  %604 = vmatprep.subr.mxu0 0.0
  %605 = vmatpush1.msra.mxu0 0.0
  %606 = vmatprep.subr.mxu0 0.0
  %607 = vmatpush1.msra.mxu0 0.0
  %608 = vmatprep.subr.mxu0 0.0
  %609 = vmatpush1.msra.mxu0 0.0
  %610 = vmatprep.subr.mxu0 0.0
  %611 = vmatpush1.msra.mxu0 0.0
  %612 = vmatprep.subr.mxu0 0.0
  %613 = vmatpush1.msra.mxu0 0.0
  %614 = vmatprep.subr.mxu0 0.0
  %615 = vmatpush1.msra.mxu0 0.0
  %616 = vmatprep.subr.mxu0 0.0
  %617 = vmatpush1.msra.mxu0 0.0
  %618 = vmatprep.subr.mxu0 0.0
  %619 = vmatpush1.msra.mxu0 0.0
  %620 = vmatprep.subr.mxu0 0.0
  %621 = vmatpush1.msra.mxu0 0.0
  %622 = vmatprep.subr.mxu0 0.0
  %623 = vmatpush1.msra.mxu0 0.0
  %624 = vmatprep.subr.mxu0 0.0
  %625 = vmatpush1.msra.mxu0 0.0
  %626 = vmatprep.subr.mxu0 0.0
  %627 = vmatpush1.msra.mxu0 0.0
  %628 = vmatprep.subr.mxu0 0.0
  %629 = vmatpush1.msra.mxu0 0.0
  %630 = vmatprep.subr.mxu0 0.0
  %631 = vmatpush1.msra.mxu0 0.0
  %632 = vmatprep.subr.mxu0 0.0
  %633 = vmatpush1.msra.mxu0 0.0
  %634 = vmatprep.subr.mxu0 0.0
  %635 = vmatpush1.msra.mxu0 0.0
  %636 = vmatprep.subr.mxu0 0.0
  %637 = vmatpush1.msra.mxu0 0.0
  %638 = vmatprep.subr.mxu0 0.0
  %639 = vmatpush1.msra.mxu0 0.0
  %640 = vmatprep.subr.mxu0 0.0
  %641 = vmatpush1.msra.mxu0 0.0
  %642 = vmatprep.subr.mxu0 0.0
  %643 = vmatpush1.msra.mxu0 0.0
  %644 = vmatprep.subr.mxu0 0.0
  %645 = vmatpush1.msra.mxu0 0.0
  %646 = vmatprep.subr.mxu0 0.0
  %647 = vmatpush1.msra.mxu0 0.0
  %648 = vmatprep.subr.mxu0 0.0
  %649 = vmatpush1.msra.mxu0 0.0
  %650 = vmatprep.subr.mxu0 0.0
  %651 = vmatpush1.msra.mxu0 0.0
  %652 = vmatprep.mubr.f32.mxu0 0.0
  %653 = vmatmul.mubr.f32.gmra.mrb[0].mxu0 %v578
  %v654 = vpop.f32.mrb[0].mxu0
  %v655 = vadd.f32 0.0, %v654
  %v656 = vpop.f32.mrb[0].mxu0
  %657 = vmatprep.mubr.f32.mxu0 0.0
  %658 = vmatmul.mubr.f32.gmra.mrb[0].mxu0 %v581
  %v659 = vpop.f32.mrb[0].mxu0
  %v660 = vadd.f32 0.0, %v659
  %v661 = vpop.f32.mrb[0].mxu0
  %662 = vmatprep.mubr.f32.mxu0 0.0
  %663 = vmatmul.mubr.f32.gmra.mrb[0].mxu0 %v583
  %v664 = vpop.f32.mrb[0].mxu0
  %v665 = vadd.f32 0.0, %v664
  %v666 = vpop.f32.mrb[0].mxu0
  %667 = vmatprep.mubr.f32.mxu0 0.0
  %668 = vmatmul.mubr.f32.gmra.mrb[0].mxu0 %v586
  %v669 = vpop.f32.mrb[0].mxu0
  %v670 = vadd.f32 0.0, %v669
  %v671 = vpop.f32.mrb[0].mxu0
  %672 = vdwg.mxu0
  %675 = vrot.lane.b32.xlu0 %v556, 64
  %v676 = vpop.permute.xlu0 %675
  %677 = vrot.lane.b32.xlu0 %v568, 64
  %v678 = vpop.permute.xlu0 %677
  %679 = vrot.lane.b32.xlu0 %v557, 64
  %v680 = vpop.permute.xlu0 %679
  %681 = vrot.lane.b32.xlu0 %v569, 64
  %v682 = vpop.permute.xlu0 %681
  %v687 = vsel %vm73, %v443, %v676
  %v688 = vsel %vm73, %v556, %v678
  %v689 = vsel %vm73, %v444, %v680
  %v690 = vsel %vm73, %v557, %v682
  %v691 = vld [vmem:[%s10] sm:$0xff]
  %v692 = vld [vmem:[%s10 + $0x8] sm:$0xff]
  %v693 = vld [vmem:[%s10 + $0x10] sm:$0xff]
  %v694 = vld [vmem:[%s10 + $0x18] sm:$0xff]
  %v695 = vld [vmem:[%s10 + $0x20] sm:$0xff]
  %v696 = vld [vmem:[%s10 + $0x28] sm:$0xff]
  %v697 = vld [vmem:[%s10 + $0x30] sm:$0xff]
  %v698 = vld [vmem:[%s10 + $0x38] sm:$0xff]
  %v699 = vld [vmem:[%s10 + $0x40] sm:$0xff]
  %v700 = vld [vmem:[%s10 + $0x48] sm:$0xff]
  %v701 = vld [vmem:[%s10 + $0x50] sm:$0xff]
  %v702 = vld [vmem:[%s10 + $0x58] sm:$0xff]
  %v703 = vld [vmem:[%s10 + $0x60] sm:$0xff]
  %v704 = vld [vmem:[%s10 + $0x68] sm:$0xff]
  %v705 = vld [vmem:[%s10 + $0x70] sm:$0xff]
  %v706 = vld [vmem:[%s10 + $0x78] sm:$0xff]
  %707 = vmatprep.subr.mxu0 0.0
  %708 = vmatpush1.msra.mxu0 %v691
  %709 = vmatprep.subr.mxu0 0.0
  %710 = vmatpush1.msra.mxu0 %v692
  %711 = vmatprep.subr.mxu0 0.0
  %712 = vmatpush1.msra.mxu0 %v693
  %713 = vmatprep.subr.mxu0 0.0
  %714 = vmatpush1.msra.mxu0 %v694
  %715 = vmatprep.subr.mxu0 0.0
  %716 = vmatpush1.msra.mxu0 %v695
  %717 = vmatprep.subr.mxu0 0.0
  %718 = vmatpush1.msra.mxu0 %v696
  %719 = vmatprep.subr.mxu0 0.0
  %720 = vmatpush1.msra.mxu0 %v697
  %721 = vmatprep.subr.mxu0 0.0
  %722 = vmatpush1.msra.mxu0 %v698
  %723 = vmatprep.subr.mxu0 0.0
  %724 = vmatpush1.msra.mxu0 %v699
  %725 = vmatprep.subr.mxu0 0.0
  %726 = vmatpush1.msra.mxu0 %v700
  %727 = vmatprep.subr.mxu0 0.0
  %728 = vmatpush1.msra.mxu0 %v701
  %729 = vmatprep.subr.mxu0 0.0
  %730 = vmatpush1.msra.mxu0 %v702
  %731 = vmatprep.subr.mxu0 0.0
  %732 = vmatpush1.msra.mxu0 %v703
  %733 = vmatprep.subr.mxu0 0.0
  %734 = vmatpush1.msra.mxu0 %v704
  %735 = vmatprep.subr.mxu0 0.0
  %736 = vmatpush1.msra.mxu0 %v705
  %737 = vmatprep.subr.mxu0 0.0
  %738 = vmatpush1.msra.mxu0 %v706
  %739 = vmatprep.subr.mxu0 0.0
  %740 = vmatpush1.msra.mxu0 0.0
  %741 = vmatprep.subr.mxu0 0.0
  %742 = vmatpush1.msra.mxu0 0.0
  %743 = vmatprep.subr.mxu0 0.0
  %744 = vmatpush1.msra.mxu0 0.0
  %745 = vmatprep.subr.mxu0 0.0
  %746 = vmatpush1.msra.mxu0 0.0
  %747 = vmatprep.subr.mxu0 0.0
  %748 = vmatpush1.msra.mxu0 0.0
  %749 = vmatprep.subr.mxu0 0.0
  %750 = vmatpush1.msra.mxu0 0.0
  %751 = vmatprep.subr.mxu0 0.0
  %752 = vmatpush1.msra.mxu0 0.0
  %753 = vmatprep.subr.mxu0 0.0
  %754 = vmatpush1.msra.mxu0 0.0
  %755 = vmatprep.subr.mxu0 0.0
  %756 = vmatpush1.msra.mxu0 0.0
  %757 = vmatprep.subr.mxu0 0.0
  %758 = vmatpush1.msra.mxu0 0.0
  %759 = vmatprep.subr.mxu0 0.0
  %760 = vmatpush1.msra.mxu0 0.0
  %761 = vmatprep.subr.mxu0 0.0
  %762 = vmatpush1.msra.mxu0 0.0
  %763 = vmatprep.subr.mxu0 0.0
  %764 = vmatpush1.msra.mxu0 0.0
  %765 = vmatprep.subr.mxu0 0.0
  %766 = vmatpush1.msra.mxu0 0.0
  %767 = vmatprep.subr.mxu0 0.0
  %768 = vmatpush1.msra.mxu0 0.0
  %769 = vmatprep.subr.mxu0 0.0
  %770 = vmatpush1.msra.mxu0 0.0
  %771 = vmatprep.mubr.f32.mxu0 0.0
  %772 = vmatmul.mubr.f32.gmra.mrb[0].mxu0 %v687
  %v773 = vpop.f32.mrb[0].mxu0
  %v774 = vadd.f32 0.0, %v773
  %v775 = vpop.f32.mrb[0].mxu0
  %776 = vmatprep.mubr.f32.mxu0 0.0
  %777 = vmatmul.mubr.f32.gmra.mrb[0].mxu0 %v688
  %v778 = vpop.f32.mrb[0].mxu0
  %v779 = vadd.f32 0.0, %v778
  %v780 = vpop.f32.mrb[0].mxu0
  %781 = vmatprep.mubr.f32.mxu0 0.0
  %782 = vmatmul.mubr.f32.gmra.mrb[0].mxu0 %v689
  %v783 = vpop.f32.mrb[0].mxu0
  %v784 = vadd.f32 0.0, %v783
  %v785 = vpop.f32.mrb[0].mxu0
  %786 = vmatprep.mubr.f32.mxu0 0.0
  %787 = vmatmul.mubr.f32.gmra.mrb[0].mxu0 %v690
  %v788 = vpop.f32.mrb[0].mxu0
  %v789 = vadd.f32 0.0, %v788
  %v790 = vpop.f32.mrb[0].mxu0
  %791 = vdwg.mxu0
  %v792 = vld [vmem:[%s11] sm:$0x1]
  %v793 = vlaneseq
  %v794 = vshrl.u32 %v793, 7
  %v795 = vsub.s32 0, %v794
  %v796 = vrot.slane %v792, %v795
  %v797 = vmul.f32 %v655, %v796
  %v798 = vmul.f32 %v660, %v796
  %v799 = vmul.f32 %v665, %v796
  %v800 = vmul.f32 %v670, %v796
  %v801 = vmul.f32 %v774, %v796
  %v802 = vmul.f32 %v779, %v796
  %v803 = vmul.f32 %v784, %v796
  %v804 = vmul.f32 %v789, %v796
  %v805 = vld [vmem:[%s11 + $0x1] sm:$0x1]
  %v806 = vlaneseq
  %v807 = vshrl.u32 %v806, 7
  %v808 = vsub.s32 0, %v807
  %v809 = vrot.slane %v805, %v808
  %v810 = vadd.f32 %v797, %v809
  %v811 = vadd.f32 %v798, %v809
  %v812 = vadd.f32 %v799, %v809
  %v813 = vadd.f32 %v800, %v809
  %v814 = vadd.f32 %v801, %v809
  %v815 = vadd.f32 %v802, %v809
  %v816 = vadd.f32 %v803, %v809
  %v817 = vadd.f32 %v804, %v809
  %v818 = vmax.f32 %v810, 0.0
  %v819 = vmax.f32 %v811, 0.0
  %v820 = vmax.f32 %v812, 0.0
  %v821 = vmax.f32 %v813, 0.0
  %v822 = vmax.f32 %v814, 0.0
  %v823 = vmax.f32 %v815, 0.0
  %v824 = vmax.f32 %v816, 0.0
  %v825 = vmax.f32 %v817, 0.0
  %v826 = vld [vmem:[%s12] sm:$0xff]
  %v827 = vld [vmem:[%s12 + $0x8] sm:$0xff]
  %v828 = vld [vmem:[%s12 + $0x10] sm:$0xff]
  %v829 = vld [vmem:[%s12 + $0x18] sm:$0xff]
  %v830 = vld [vmem:[%s12 + $0x20] sm:$0xff]
  %v831 = vld [vmem:[%s12 + $0x28] sm:$0xff]
  %v832 = vld [vmem:[%s12 + $0x30] sm:$0xff]
  %v833 = vld [vmem:[%s12 + $0x38] sm:$0xff]
  %v834 = vld [vmem:[%s12 + $0x40] sm:$0xff]
  %v835 = vld [vmem:[%s12 + $0x48] sm:$0xff]
  %v836 = vld [vmem:[%s12 + $0x50] sm:$0xff]
  %v837 = vld [vmem:[%s12 + $0x58] sm:$0xff]
  %v838 = vld [vmem:[%s12 + $0x60] sm:$0xff]
  %v839 = vld [vmem:[%s12 + $0x68] sm:$0xff]
  %v840 = vld [vmem:[%s12 + $0x70] sm:$0xff]
  %v841 = vld [vmem:[%s12 + $0x78] sm:$0xff]
  %842 = vmatprep.subr.mxu0 0.0
  %843 = vmatpush1.msra.mxu0 %v826
  %844 = vmatprep.subr.mxu0 0.0
  %845 = vmatpush1.msra.mxu0 %v827
  %846 = vmatprep.subr.mxu0 0.0
  %847 = vmatpush1.msra.mxu0 %v828
  %848 = vmatprep.subr.mxu0 0.0
  %849 = vmatpush1.msra.mxu0 %v829
  %850 = vmatprep.subr.mxu0 0.0
  %851 = vmatpush1.msra.mxu0 %v830
  %852 = vmatprep.subr.mxu0 0.0
  %853 = vmatpush1.msra.mxu0 %v831
  %854 = vmatprep.subr.mxu0 0.0
  %855 = vmatpush1.msra.mxu0 %v832
  %856 = vmatprep.subr.mxu0 0.0
  %857 = vmatpush1.msra.mxu0 %v833
  %858 = vmatprep.subr.mxu0 0.0
  %859 = vmatpush1.msra.mxu0 %v834
  %860 = vmatprep.subr.mxu0 0.0
  %861 = vmatpush1.msra.mxu0 %v835
  %862 = vmatprep.subr.mxu0 0.0
  %863 = vmatpush1.msra.mxu0 %v836
  %864 = vmatprep.subr.mxu0 0.0
  %865 = vmatpush1.msra.mxu0 %v837
  %866 = vmatprep.subr.mxu0 0.0
  %867 = vmatpush1.msra.mxu0 %v838
  %868 = vmatprep.subr.mxu0 0.0
  %869 = vmatpush1.msra.mxu0 %v839
  %870 = vmatprep.subr.mxu0 0.0
  %871 = vmatpush1.msra.mxu0 %v840
  %872 = vmatprep.subr.mxu0 0.0
  %873 = vmatpush1.msra.mxu0 %v841
  %874 = vmatprep.subr.mxu0 0.0
  %875 = vmatpush1.msra.mxu0 0.0
  %876 = vmatprep.subr.mxu0 0.0
  %877 = vmatpush1.msra.mxu0 0.0
  %878 = vmatprep.subr.mxu0 0.0
  %879 = vmatpush1.msra.mxu0 0.0
  %880 = vmatprep.subr.mxu0 0.0
  %881 = vmatpush1.msra.mxu0 0.0
  %882 = vmatprep.subr.mxu0 0.0
  %883 = vmatpush1.msra.mxu0 0.0
  %884 = vmatprep.subr.mxu0 0.0
  %885 = vmatpush1.msra.mxu0 0.0
  %886 = vmatprep.subr.mxu0 0.0
  %887 = vmatpush1.msra.mxu0 0.0
  %888 = vmatprep.subr.mxu0 0.0
  %889 = vmatpush1.msra.mxu0 0.0
  %890 = vmatprep.subr.mxu0 0.0
  %891 = vmatpush1.msra.mxu0 0.0
  %892 = vmatprep.subr.mxu0 0.0
  %893 = vmatpush1.msra.mxu0 0.0
  %894 = vmatprep.subr.mxu0 0.0
  %895 = vmatpush1.msra.mxu0 0.0
  %896 = vmatprep.subr.mxu0 0.0
  %897 = vmatpush1.msra.mxu0 0.0
  %898 = vmatprep.subr.mxu0 0.0
  %899 = vmatpush1.msra.mxu0 0.0
  %900 = vmatprep.subr.mxu0 0.0
  %901 = vmatpush1.msra.mxu0 0.0
  %902 = vmatprep.subr.mxu0 0.0
  %903 = vmatpush1.msra.mxu0 0.0
  %904 = vmatprep.subr.mxu0 0.0
  %905 = vmatpush1.msra.mxu0 0.0
  %906 = vmatprep.mubr.f32.mxu0 0.0
  %907 = vmatmul.mubr.f32.gmra.mrb[0].mxu0 %v818
  %v908 = vpop.f32.mrb[0].mxu0
  %v909 = vadd.f32 0.0, %v908
  %v910 = vpop.f32.mrb[0].mxu0
  %911 = vmatprep.mubr.f32.mxu0 0.0
  %912 = vmatmul.mubr.f32.gmra.mrb[0].mxu0 %v819
  %v913 = vpop.f32.mrb[0].mxu0
  %v914 = vadd.f32 0.0, %v913
  %v915 = vpop.f32.mrb[0].mxu0
  %916 = vmatprep.mubr.f32.mxu0 0.0
  %917 = vmatmul.mubr.f32.gmra.mrb[0].mxu0 %v820
  %v918 = vpop.f32.mrb[0].mxu0
  %v919 = vadd.f32 0.0, %v918
  %v920 = vpop.f32.mrb[0].mxu0
  %921 = vmatprep.mubr.f32.mxu0 0.0
  %922 = vmatmul.mubr.f32.gmra.mrb[0].mxu0 %v821
  %v923 = vpop.f32.mrb[0].mxu0
  %v924 = vadd.f32 0.0, %v923
  %v925 = vpop.f32.mrb[0].mxu0
  %926 = vmatprep.mubr.f32.mxu0 0.0
  %927 = vmatmul.mubr.f32.gmra.mrb[0].mxu0 %v822
  %v928 = vpop.f32.mrb[0].mxu0
  %v929 = vadd.f32 0.0, %v928
  %v930 = vpop.f32.mrb[0].mxu0
  %931 = vmatprep.mubr.f32.mxu0 0.0
  %932 = vmatmul.mubr.f32.gmra.mrb[0].mxu0 %v823
  %v933 = vpop.f32.mrb[0].mxu0
  %v934 = vadd.f32 0.0, %v933
  %v935 = vpop.f32.mrb[0].mxu0
  %936 = vmatprep.mubr.f32.mxu0 0.0
  %937 = vmatmul.mubr.f32.gmra.mrb[0].mxu0 %v824
  %v938 = vpop.f32.mrb[0].mxu0
  %v939 = vadd.f32 0.0, %v938
  %v940 = vpop.f32.mrb[0].mxu0
  %941 = vmatprep.mubr.f32.mxu0 0.0
  %942 = vmatmul.mubr.f32.gmra.mrb[0].mxu0 %v825
  %v943 = vpop.f32.mrb[0].mxu0
  %v944 = vadd.f32 0.0, %v943
  %v945 = vpop.f32.mrb[0].mxu0
  %946 = vdwg.mxu0
  %v947 = vld [vmem:[%s13] sm:$0x1]
  %v948 = vlaneseq
  %v949 = vshrl.u32 %v948, 7
  %v950 = vsub.s32 0, %v949
  %v951 = vrot.slane %v947, %v950
  %v952 = vmul.f32 %v909, %v951
  %v953 = vmul.f32 %v914, %v951
  %v954 = vmul.f32 %v919, %v951
  %v955 = vmul.f32 %v924, %v951
  %v956 = vmul.f32 %v929, %v951
  %v957 = vmul.f32 %v934, %v951
  %v958 = vmul.f32 %v939, %v951
  %v959 = vmul.f32 %v944, %v951
  %v960 = vld [vmem:[%s13 + $0x1] sm:$0x1]
  %v961 = vlaneseq
  %v962 = vshrl.u32 %v961, 7
  %v963 = vsub.s32 0, %v962
  %v964 = vrot.slane %v960, %v963
  %v965 = vadd.f32 %v952, %v964
  %v966 = vadd.f32 %v953, %v964
  %v967 = vadd.f32 %v954, %v964
  %v968 = vadd.f32 %v955, %v964
  %v969 = vadd.f32 %v956, %v964
  %v970 = vadd.f32 %v957, %v964
  %v971 = vadd.f32 %v958, %v964
  %v972 = vadd.f32 %v959, %v964
  %v973 = vld [vmem:[%s1] sm:$0xff]
  %v974 = vld [vmem:[%s1 + $0x8] sm:$0xff]
  %v975 = vld [vmem:[%s1 + $0x10] sm:$0xff]
  %v976 = vld [vmem:[%s1 + $0x18] sm:$0xff]
  %v977 = vld [vmem:[%s1 + $0x20] sm:$0xff]
  %v978 = vld [vmem:[%s1 + $0x28] sm:$0xff]
  %v979 = vld [vmem:[%s1 + $0x30] sm:$0xff]
  %v980 = vld [vmem:[%s1 + $0x38] sm:$0xff]
  %v981 = vxor.u32 %v965, 2147483648
  %v982 = vxor.u32 %v966, 2147483648
  %v983 = vxor.u32 %v967, 2147483648
  %v984 = vxor.u32 %v968, 2147483648
  %v985 = vxor.u32 %v969, 2147483648
  %v986 = vxor.u32 %v970, 2147483648
  %v987 = vxor.u32 %v971, 2147483648
  %v988 = vxor.u32 %v972, 2147483648
  %v989 = vmul.f32 %v981, 1.442695
  %v990 = vpow.pop %v989
  %v991 = vmul.f32 %v982, 1.442695
  %v992 = vpow.pop %v991
  %v993 = vmul.f32 %v983, 1.442695
  %v994 = vpow.pop %v993
  %v995 = vmul.f32 %v984, 1.442695
  %v996 = vpow.pop %v995
  %v997 = vmul.f32 %v985, 1.442695
  %v998 = vpow.pop %v997
  %v999 = vmul.f32 %v986, 1.442695
  %v1000 = vpow.pop %v999
  %v1001 = vmul.f32 %v987, 1.442695
  %v1002 = vpow.pop %v1001
  %v1003 = vmul.f32 %v988, 1.442695
  %v1004 = vpow.pop %v1003
  %v1005 = vadd.f32 %v990, 1.0
  %v1006 = vadd.f32 %v992, 1.0
  %v1007 = vadd.f32 %v994, 1.0
  %v1008 = vadd.f32 %v996, 1.0
  %v1009 = vadd.f32 %v998, 1.0
  %v1010 = vadd.f32 %v1000, 1.0
  %v1011 = vadd.f32 %v1002, 1.0
  %v1012 = vadd.f32 %v1004, 1.0
  %v1013 = vrcp.pop %v1005
  %v1014 = vmul.f32 1.0, %v1013
  %v1015 = vrcp.pop %v1006
  %v1016 = vmul.f32 1.0, %v1015
  %v1017 = vrcp.pop %v1007
  %v1018 = vmul.f32 1.0, %v1017
  %v1019 = vrcp.pop %v1008
  %v1020 = vmul.f32 1.0, %v1019
  %v1021 = vrcp.pop %v1009
  %v1022 = vmul.f32 1.0, %v1021
  %v1023 = vrcp.pop %v1010
  %v1024 = vmul.f32 1.0, %v1023
  %v1025 = vrcp.pop %v1011
  %v1026 = vmul.f32 1.0, %v1025
  %v1027 = vrcp.pop %v1012
  %v1028 = vmul.f32 1.0, %v1027
  %v1029 = vmul.f32 %v973, %v1014
  %v1030 = vmul.f32 %v974, %v1016
  %v1031 = vmul.f32 %v975, %v1018
  %v1032 = vmul.f32 %v976, %v1020
  %v1033 = vmul.f32 %v977, %v1022
  %v1034 = vmul.f32 %v978, %v1024
  %v1035 = vmul.f32 %v979, %v1026
  %v1036 = vmul.f32 %v980, %v1028
  %1037 = vst [vmem:[%s15] sm:$0xff] %v1029
  %1038 = vst [vmem:[%s15 + $0x8] sm:$0xff] %v1030
  %1039 = vst [vmem:[%s15 + $0x10] sm:$0xff] %v1031
  %1040 = vst [vmem:[%s15 + $0x18] sm:$0xff] %v1032
  %1041 = vst [vmem:[%s15 + $0x20] sm:$0xff] %v1033
  %1042 = vst [vmem:[%s15 + $0x28] sm:$0xff] %v1034
  %1043 = vst [vmem:[%s15 + $0x30] sm:$0xff] %v1035
  %1044 = vst [vmem:[%s15 + $0x38] sm:$0xff] %v1036
  // Predicated region
  $region58: #{decoder_forward.1} parent=0 // pred_check
    _
  $region59: #{decoder_forward.1} parent=0 // pred_check_branch
    %1046 = sbr.rel (0) target = $region61
  $region60: #{decoder_forward.1} parent=0 // pred_region
    _
  $region61: #{decoder_forward.1} parent=0 // pred_fallthru
    _
  // Predicated region
  $region62: #{decoder_forward.1} parent=0 // pred_check
    _
  $region63: #{decoder_forward.1} parent=0 // pred_check_branch
    %1048 = sbr.rel (0) target = $region65
  $region64: #{decoder_forward.1} parent=0 // pred_region
    _
  $region65: #{decoder_forward.1} parent=0 // pred_fallthru
    _
  // Predicated region
  $region66: #{decoder_forward.1} parent=0 // pred_check
    _
  $region67: #{decoder_forward.1} parent=0 // pred_check_branch
    %1050 = sbr.rel (0) target = $region69
  $region68: #{decoder_forward.1} parent=0 // pred_region
    _
  $region69: #{decoder_forward.1} parent=0 // pred_fallthru
    _
  // Predicated region
  $region70: #{decoder_forward.1} parent=0 // pred_check
    _
  $region71: #{decoder_forward.1} parent=0 // pred_check_branch
    %1052 = sbr.rel (0) target = $region73
  $region72: #{decoder_forward.1} parent=0 // pred_region
    _
  $region73: #{decoder_forward.1} parent=0 // pred_fallthru
    _

</llo_original>
